<compile_context>
chip_gen: v5e
topology: v5e:2x2
jax: 0.10.0
libtpu: 0.0.40
codegen_flags: <defaults>
</compile_context>

<pallas_src>
import jax
import jax.numpy as jnp
from jax.experimental import pallas as pl
from jax.experimental.pallas import tpu as pltpu


def _round_up(v: int, m: int) -> int:
    return ((v + m - 1) // m) * m


def _tpu_generation() -> int:
    """Best-effort TPU generation from device_kind; defaults to 6."""
    try:
        kind = jax.devices()[0].device_kind.lower()
    except Exception:
        return 6
    for gen in (7, 6, 5, 4, 3, 2):
        if (f"v{gen}" in kind) or (f"tpu{gen}" in kind):
            return gen
    return 6


def _make_mlp_kernel(num_layers: int, compute_dtype):
    """Fused kernel: out = ... relu(relu(x @ W0) @ W1) ... @ W_{L-1}."""

    def kernel(*refs):
        x_ref = refs[0]
        w_refs = refs[1:1 + num_layers]
        o_ref = refs[1 + num_layers]

        act = x_ref[...]
        for i, w_ref in enumerate(w_refs):
            if i > 0:
                # ReLU between layers (not after the last), matching the
                # reference module.  Zero-padded lanes stay zero.  Cast back
                # to the compute dtype so bf16 mode keeps feeding bf16 to the
                # MXU (accumulation stays f32 via preferred_element_type).
                act = jnp.maximum(act, 0.0).astype(compute_dtype)
            act = jnp.dot(act, w_ref[...], preferred_element_type=jnp.float32)
        o_ref[...] = act.astype(o_ref.dtype)

    return kernel


def _choose_row_tile(m: int, gen: int):
    """Pick (tm, m_pad): row tile and padded row count."""
    m8 = _round_up(max(m, 1), 8)
    num_tcs = 2 if gen >= 7 else 1
    # Smaller per-tile row cap on v7x (64 MiB VMEM per TensorCore).
    cap = 256 if gen >= 7 else 512

    if m8 <= cap * num_tcs:
        if num_tcs > 1 and m8 >= 16:
            # Ensure >= 2 grid steps so the "parallel" axis shards across the
            # two v7x TensorCores (each holds its own resident weight copy).
            tm = _round_up(pl.cdiv(m8, num_tcs), 8)
        else:
            tm = m8
    else:
        # Large M: pick tm from {128, 256, cap} minimizing row-padding waste,
        # preferring the largest tm on ties (less per-step overhead).
        best = None
        for t in sorted({128, 256, cap}, reverse=True):
            waste = _round_up(m8, t) - m8
            if best is None or waste < best[0]:
                best = (waste, t)
        tm = best[1]

    m_pad = _round_up(m8, tm)
    return tm, m_pad


def make_mlp_forward(params, *, use_bf16: bool = False):
    """Build a fused-MLP forward fn.  params[i] has shape (in_i, out_i)."""
    gen = _tpu_generation()
    # 256-lane padding fills the 256x256 MXU on v6e/v7x; 128 is optimal on
    # v5e's 128x128 MXU (and keeps (8,128) divisibility either way).
    lane = 256 if gen >= 6 else 128

    num_layers = len(params)
    dims = [int(params[0].shape[0])] + [int(w.shape[1]) for w in params]
    pdims = [_round_up(d, lane) for d in dims]

    compute_dtype = jnp.bfloat16 if use_bf16 else jnp.float32
    # Pad (and optionally cast) weights ONCE, outside the per-call hot path.
    ws_p = tuple(
        jnp.pad(w, ((0, pdims[i] - dims[i]), (0, pdims[i + 1] - dims[i + 1])))
        .astype(compute_dtype)
        for i, w in enumerate(params))

    kernel = _make_mlp_kernel(num_layers, compute_dtype)
    w_itemsize = jnp.dtype(compute_dtype).itemsize
    weight_bytes = sum(pdims[i] * pdims[i + 1]
                       for i in range(num_layers)) * w_itemsize
    phys_vmem = (64 if gen >= 7 else 128) << 20

    def build(single_buffer_weights: bool):
        @jax.jit
        def forward(x, ws):
            # x.view(-1, n_units[0])
            x2d = x.reshape(-1, dims[0])
            m = x2d.shape[0]
            tm, m_pad = _choose_row_tile(m, gen)

            x_p = jnp.pad(
                x2d, ((0, m_pad - m), (0, pdims[0] - dims[0]))
            ).astype(compute_dtype)

            in_specs = [pl.BlockSpec((tm, pdims[0]), lambda i: (i, 0))]
            for li in range(num_layers):
                if single_buffer_weights:
                    # Constant index_map -> block never changes; one VMEM
                    # buffer is enough (halves resident-weight footprint).
                    spec = pl.BlockSpec((pdims[li], pdims[li + 1]),
                                        lambda i: (0, 0),
                                        pipeline_mode=pl.Buffered(1))
                else:
                    spec = pl.BlockSpec((pdims[li], pdims[li + 1]),
                                        lambda i: (0, 0))
                in_specs.append(spec)
            out_spec = pl.BlockSpec((tm, pdims[-1]), lambda i: (i, 0))

            # Explicit VMEM budget: resident weights + double-buffered I/O
            # blocks + intermediate-activation headroom.
            wbuf = 1 if single_buffer_weights else 2
            in_block = tm * pdims[0] * w_itemsize
            out_block = tm * pdims[-1] * 4
            act_scratch = 2 * tm * max(pdims) * 4
            need = weight_bytes * wbuf + 2 * (in_block + out_block) + act_scratch
            vmem_limit = int(min(max(need * 5 // 4 + (4 << 20), 32 << 20),
                                 phys_vmem - (4 << 20)))
            # TODO(synk): if `need` exceeds the per-core VMEM budget, fall back
            # to a K/N-tiled per-layer matmul instead of fully-resident weights.

            # Advisory cost estimate using the padded sizes actually moved.
            wsum_p = sum(pdims[i] * pdims[i + 1] for i in range(num_layers))
            cost = pl.CostEstimate(
                flops=2 * m_pad * wsum_p,
                transcendentals=0,
                bytes_accessed=(m_pad * pdims[0] * w_itemsize + weight_bytes
                                + m_pad * pdims[-1] * 4),
            )

            out_p = pl.pallas_call(
                kernel,
                out_shape=jax.ShapeDtypeStruct((m_pad, pdims[-1]), jnp.float32),
                grid_spec=pltpu.PrefetchScalarGridSpec(
                    num_scalar_prefetch=0,
                    grid=(m_pad // tm,),
                    in_specs=in_specs,
                    out_specs=out_spec,
                ),
                compiler_params=pltpu.CompilerParams(
                    dimension_semantics=("parallel",),
                    vmem_limit_bytes=vmem_limit,
                ),
                cost_estimate=cost,
            )(x_p, *ws)

            # Strip row/lane padding; keep the caller's dtype (f32).
            return out_p[:m, :dims[-1]].astype(x.dtype)

        return forward

    fwd_fast = build(True)    # single-buffered weights
    fwd_safe = build(False)   # default double-buffered weights
    state = {"fwd": fwd_fast}

    def call(x):
        try:
            return state["fwd"](x, ws_p)
        except Exception:
            if state["fwd"] is not fwd_safe:
                # pl.Buffered(1) rejected by this jax/Mosaic version; fall
                # back to default (double-buffered) weight BlockSpecs.
                state["fwd"] = fwd_safe
                return fwd_safe(x, ws_p)
            raise

    return call


def init_mlp_params(key, n_units):
    """Deterministic init matching nn.Linear(bias=False) shapes.

    Torch default init is U(-1/sqrt(fan_in), 1/sqrt(fan_in)).  Weights are
    returned already transposed to (in_features, out_features).
    """
    params = []
    for i in range(1, len(n_units)):
        fan_in, fan_out = n_units[i - 1], n_units[i]
        key, sub = jax.random.split(key)
        bound = 1.0 / jnp.sqrt(jnp.float32(fan_in))
        w_torch = jax.random.uniform(
            sub, (fan_out, fan_in), dtype=jnp.float32,
            minval=-bound, maxval=bound)          # torch layout (out, in)
        params.append(w_torch.T)                  # kernel layout (in, out)
    return params


def mlp_reference(x, params):
    x2d = x.reshape(-1, params[0].shape[0])
    out = x2d @ params[0]
    for w in params[1:]:
        out = jnp.maximum(out, 0.0) @ w
    return out


if __name__ == "__main__":
    n_units = [256, 128, 64]          # MLP([256, 128, 64])
    key = jax.random.PRNGKey(0)
    key, xkey = jax.random.split(key)

    # Input of shape (8, 4, 8, 8): flattens to (8, 256) = (M, n_units[0]).
    x = jax.random.normal(xkey, (8, 4, 8, 8), dtype=jnp.float32)
    params = init_mlp_params(key, n_units)

    # f32 by default (bit-comparable to the PyTorch reference);
    # use_bf16=True is the opt-in fast path with f32 accumulation.
    mlp = make_mlp_forward(params, use_bf16=False)

    out = jax.block_until_ready(mlp(x))

    ref = mlp_reference(x, params)
    assert out.shape == (8, n_units[-1]), out.shape
    assert jnp.allclose(out, ref, atol=1e-4, rtol=1e-4), "mismatch vs reference"

    print("KERNEL_OK")
</pallas_src>

<mosaic_0001>
module attributes {stable_mosaic.version = 11 : i64} {
  func.func @kernel(%arg0: i32, %arg1: memref<8x256xf32, #tpu.memory_space<vmem>>, %arg2: memref<256x256xf32, #tpu.memory_space<vmem>>, %arg3: memref<256x256xf32, #tpu.memory_space<vmem>>, %arg4: memref<8x256xf32, #tpu.memory_space<vmem>>) attributes {dimension_semantics = [#tpu.dimension_semantics<parallel>], iteration_bounds = array<i64: 1>, scalar_prefetch = 0 : i64, scratch_operands = 0 : i64, tpu.core_type = #tpu.core_type<tc>, window_params = [{transform_indices = @transform_0, window_bounds = array<i64: 8, 256>}, {pipeline_mode = #tpu.pipeline_mode<synchronous>, transform_indices = @transform_1, window_bounds = array<i64: 256, 256>}, {pipeline_mode = #tpu.pipeline_mode<synchronous>, transform_indices = @transform_2, window_bounds = array<i64: 256, 256>}, {transform_indices = @transform_3, window_bounds = array<i64: 8, 256>}]} {
    %c0 = arith.constant 0 : index
    %c0_0 = arith.constant 0 : index
    %0 = vector.load %arg1[%c0, %c0_0] : memref<8x256xf32, #tpu.memory_space<vmem>>, vector<8x256xf32>
    %c0_1 = arith.constant 0 : index
    %c0_2 = arith.constant 0 : index
    %1 = vector.load %arg2[%c0_1, %c0_2] : memref<256x256xf32, #tpu.memory_space<vmem>>, vector<256x256xf32>
    %cst = arith.constant dense<0.000000e+00> : vector<8x256xf32>
    %2 = tpu.matmul %0, %1, %cst {dimension_numbers = #tpu.dot_dimension_numbers<[1], [0], [0], [1], [0, 0, 1, 1], [], []>} : vector<8x256xf32>, vector<256x256xf32>, vector<8x256xf32> -> vector<8x256xf32>
    %cst_3 = arith.constant 0.000000e+00 : f32
    %3 = vector.broadcast %cst_3 : f32 to vector<8x256xf32>
    %4 = arith.maximumf %2, %3 : vector<8x256xf32>
    %c0_4 = arith.constant 0 : index
    %c0_5 = arith.constant 0 : index
    %5 = vector.load %arg3[%c0_4, %c0_5] : memref<256x256xf32, #tpu.memory_space<vmem>>, vector<256x256xf32>
    %cst_6 = arith.constant dense<0.000000e+00> : vector<8x256xf32>
    %6 = tpu.matmul %4, %5, %cst_6 {dimension_numbers = #tpu.dot_dimension_numbers<[1], [0], [0], [1], [0, 0, 1, 1], [], []>} : vector<8x256xf32>, vector<256x256xf32>, vector<8x256xf32> -> vector<8x256xf32>
    %c0_7 = arith.constant 0 : index
    %c0_8 = arith.constant 0 : index
    %7 = vector.load %arg4[%c0_7, %c0_8] : memref<8x256xf32, #tpu.memory_space<vmem>>, vector<8x256xf32>
    tpu.vector_store %arg4[%c0_7, %c0_8], %6 {strides = array<i32>} : memref<8x256xf32, #tpu.memory_space<vmem>>, vector<8x256xf32>,
    return
  }
  func.func @transform_0(%arg0: i32) -> (i32, i32) {
    %c0_i32 = arith.constant 0 : i32
    %c0_i32_0 = arith.constant 0 : i32
    return %arg0, %c0_i32 : i32, i32
  }
  func.func @transform_1(%arg0: i32) -> (i32, i32) {
    %c0_i32 = arith.constant 0 : i32
    %c0_i32_0 = arith.constant 0 : i32
    %c0_i32_1 = arith.constant 0 : i32
    return %c0_i32, %c0_i32_0 : i32, i32
  }
  func.func @transform_2(%arg0: i32) -> (i32, i32) {
    %c0_i32 = arith.constant 0 : i32
    %c0_i32_0 = arith.constant 0 : i32
    %c0_i32_1 = arith.constant 0 : i32
    return %c0_i32, %c0_i32_0 : i32, i32
  }
  func.func @transform_3(%arg0: i32) -> (i32, i32) {
    %c0_i32 = arith.constant 0 : i32
    %c0_i32_0 = arith.constant 0 : i32
    return %arg0, %c0_i32 : i32, i32
  }
}

module attributes {stable_mosaic.version = 11 : i64} {
  func.func @kernel(%arg0: i32, %arg1: memref<8x256xf32, #tpu.memory_space<vmem>>, %arg2: memref<256x256xf32, #tpu.memory_space<vmem>>, %arg3: memref<256x256xf32, #tpu.memory_space<vmem>>, %arg4: memref<8x256xf32, #tpu.memory_space<vmem>>) attributes {dimension_semantics = [#tpu.dimension_semantics<parallel>], iteration_bounds = array<i64: 1>, scalar_prefetch = 0 : i64, scratch_operands = 0 : i64, tpu.core_type = #tpu.core_type<tc>, window_params = [{transform_indices = @transform_0, window_bounds = array<i64: 8, 256>}, {pipeline_mode = #tpu.pipeline_mode<synchronous>, transform_indices = @transform_1, window_bounds = array<i64: 256, 256>}, {pipeline_mode = #tpu.pipeline_mode<synchronous>, transform_indices = @transform_2, window_bounds = array<i64: 256, 256>}, {transform_indices = @transform_3, window_bounds = array<i64: 8, 256>}]} {
    %c0 = arith.constant 0 : index
    %c0_0 = arith.constant 0 : index
    %0 = vector.load %arg1[%c0, %c0_0] : memref<8x256xf32, #tpu.memory_space<vmem>>, vector<8x256xf32>
    %c0_1 = arith.constant 0 : index
    %c0_2 = arith.constant 0 : index
    %1 = vector.load %arg2[%c0_1, %c0_2] : memref<256x256xf32, #tpu.memory_space<vmem>>, vector<256x256xf32>
    %cst = arith.constant dense<0.000000e+00> : vector<8x256xf32>
    %2 = tpu.matmul %0, %1, %cst {dimension_numbers = #tpu.dot_dimension_numbers<[1], [0], [0], [1], [0, 0, 1, 1], [], []>} : vector<8x256xf32>, vector<256x256xf32>, vector<8x256xf32> -> vector<8x256xf32>
    %cst_3 = arith.constant 0.000000e+00 : f32
    %3 = vector.broadcast %cst_3 : f32 to vector<8x256xf32>
    %4 = arith.maximumf %2, %3 : vector<8x256xf32>
    %c0_4 = arith.constant 0 : index
    %c0_5 = arith.constant 0 : index
    %5 = vector.load %arg3[%c0_4, %c0_5] : memref<256x256xf32, #tpu.memory_space<vmem>>, vector<256x256xf32>
    %cst_6 = arith.constant dense<0.000000e+00> : vector<8x256xf32>
    %6 = tpu.matmul %4, %5, %cst_6 {dimension_numbers = #tpu.dot_dimension_numbers<[1], [0], [0], [1], [0, 0, 1, 1], [], []>} : vector<8x256xf32>, vector<256x256xf32>, vector<8x256xf32> -> vector<8x256xf32>
    %c0_7 = arith.constant 0 : index
    %c0_8 = arith.constant 0 : index
    %7 = vector.load %arg4[%c0_7, %c0_8] : memref<8x256xf32, #tpu.memory_space<vmem>>, vector<8x256xf32>
    tpu.vector_store %arg4[%c0_7, %c0_8], %6 {strides = array<i32>} : memref<8x256xf32, #tpu.memory_space<vmem>>, vector<8x256xf32>,
    return
  }
  func.func @transform_0(%arg0: i32) -> (i32, i32) {
    %c0_i32 = arith.constant 0 : i32
    %c0_i32_0 = arith.constant 0 : i32
    return %arg0, %c0_i32 : i32, i32
  }
  func.func @transform_1(%arg0: i32) -> (i32, i32) {
    %c0_i32 = arith.constant 0 : i32
    %c0_i32_0 = arith.constant 0 : i32
    %c0_i32_1 = arith.constant 0 : i32
    return %c0_i32, %c0_i32_0 : i32, i32
  }
  func.func @transform_2(%arg0: i32) -> (i32, i32) {
    %c0_i32 = arith.constant 0 : i32
    %c0_i32_0 = arith.constant 0 : i32
    %c0_i32_1 = arith.constant 0 : i32
    return %c0_i32, %c0_i32_0 : i32, i32
  }
  func.func @transform_3(%arg0: i32) -> (i32, i32) {
    %c0_i32 = arith.constant 0 : i32
    %c0_i32_0 = arith.constant 0 : i32
    return %arg0, %c0_i32 : i32, i32
  }
}

</mosaic_0001>

<llo_original>
// kernel: forward.1
$region0: #{forward.1}
  #allocation0 [shape = 'u32[]', space=smem, size = 0x4, offset = 0x4, fixed_abs, tag = 'smem constant byte address 0x4 - core index']
  #allocation1 [shape = 'u32[72,128]{1,0:T(1,128)}', space=vmem, size = 0x9000, scoped, tag = 'internal scratch']
  %s0 = inlined_call_operand.vmem [shape: f32[8,256], index: 0, kind: input, shape index: {}]
  %s1 = inlined_call_operand.hbm [shape: f32[256,256], index: 1, kind: input, shape index: {}]
  %s2 = inlined_call_operand.hbm [shape: f32[256,256], index: 2, kind: input, shape index: {}]
  %s3 = inlined_call_operand.vmem [shape: f32[8,256], index: 3, kind: output, shape index: {}]
  %s4 = sld [smem:[#allocation0]]
  $region30: #{forward.1} parent=0
    _
  %s6 = ssub.s32 1, %s4
  %s7 = scalar_select 0, %s6, %s4
  $region1: #{forward.1} parent=0
    #allocation2 [shape = 'u8[262144]{0}', space=vmem, size = 0x40000, scoped, tag = 'input window, operand 1, single buffered']
    #allocation3 [shape = 's32[1]{0}', space=sflag, size = 0x4, scoped, tag = 'scoped memory for forward.1']
    #allocation4 [shape = 'u8[262144]{0}', space=vmem, size = 0x40000, scoped, tag = 'input window, operand 2, single buffered']
    #allocation5 [shape = 's32[1]{0}', space=sflag, size = 0x4, scoped, tag = 'scoped memory for forward.1']
    %8 = vsyncpa [#allocation3], 0
    %9 = vsyncpa [#allocation5], 0
    // Predicated region
    $region2: #{forward.1} parent=1 // pred_check
      _
    $region3: #{forward.1} parent=1 // pred_check_branch
      %11 = sbr.rel (0) target = $region5
    $region4: #{forward.1} parent=1 // pred_region
      _
    $region5: #{forward.1} parent=1 // pred_fallthru
      _
    // Predicated region
    $region6: #{forward.1} parent=1 // pred_check
      _
    $region7: #{forward.1} parent=1 // pred_check_branch
      %13 = sbr.rel (0) target = $region9
    $region8: #{forward.1} parent=1 // pred_region
      %15 = vsyncadd [#allocation3], 0
      %s16 = sshll.u32 %s1, 4
      %s17 = int_to_ptr.hbm [resolvable:$true] %s16
      %s18 = sshll.u32 [#allocation2], 4
      %s19 = int_to_ptr.vmem [resolvable:$true] %s18
      %24 = dma.hbm_to_vmem [thread:$0]  %s17, 8192, %s19, [#allocation3], 256, 256, 16
    $region9: #{forward.1} parent=1 // pred_fallthru
      _
    // Predicated region
    $region10: #{forward.1} parent=1 // pred_check
      _
    $region11: #{forward.1} parent=1 // pred_check_branch
      %26 = sbr.rel (0) target = $region13
    $region12: #{forward.1} parent=1 // pred_region
      %28 = vsyncadd [#allocation5], 0
      %s29 = sshll.u32 %s2, 4
      %s30 = int_to_ptr.hbm [resolvable:$true] %s29
      %s31 = sshll.u32 [#allocation4], 4
      %s32 = int_to_ptr.vmem [resolvable:$true] %s31
      %37 = dma.hbm_to_vmem [thread:$0]  %s30, 8192, %s32, [#allocation5], 256, 256, 16
    $region13: #{forward.1} parent=1 // pred_fallthru
      _
    // Predicated region
    $region14: #{forward.1} parent=1 // pred_check
      _
    $region15: #{forward.1} parent=1 // pred_check_branch
      %39 = sbr.rel (0) target = $region17
    $region16: #{forward.1} parent=1 // pred_region
      %41 = dma.done [#allocation3], 8192
    $region17: #{forward.1} parent=1 // pred_fallthru
      _
    // Predicated region
    $region18: #{forward.1} parent=1 // pred_check
      _
    $region19: #{forward.1} parent=1 // pred_check_branch
      %43 = sbr.rel (0) target = $region21
    $region20: #{forward.1} parent=1 // pred_region
      %45 = dma.done [#allocation5], 8192
    $region21: #{forward.1} parent=1 // pred_fallthru
      _
    %v46 = vld [vmem:[%s0] sm:$0xff]
    %v47 = vld [vmem:[%s0 + $0x8] sm:$0xff]
    %v48 = vld [vmem:[#allocation2] sm:$0xff]
    %v49 = vld [vmem:[#allocation2 + $0x8] sm:$0xff]
    %v50 = vld [vmem:[#allocation2 + $0x10] sm:$0xff]
    %v51 = vld [vmem:[#allocation2 + $0x18] sm:$0xff]
    %v52 = vld [vmem:[#allocation2 + $0x20] sm:$0xff]
    %v53 = vld [vmem:[#allocation2 + $0x28] sm:$0xff]
    %v54 = vld [vmem:[#allocation2 + $0x30] sm:$0xff]
    %v55 = vld [vmem:[#allocation2 + $0x38] sm:$0xff]
    %v56 = vld [vmem:[#allocation2 + $0x40] sm:$0xff]
    %v57 = vld [vmem:[#allocation2 + $0x48] sm:$0xff]
    %v58 = vld [vmem:[#allocation2 + $0x50] sm:$0xff]
    %v59 = vld [vmem:[#allocation2 + $0x58] sm:$0xff]
    %v60 = vld [vmem:[#allocation2 + $0x60] sm:$0xff]
    %v61 = vld [vmem:[#allocation2 + $0x68] sm:$0xff]
    %v62 = vld [vmem:[#allocation2 + $0x70] sm:$0xff]
    %v63 = vld [vmem:[#allocation2 + $0x78] sm:$0xff]
    %v64 = vld [vmem:[#allocation2 + $0x80] sm:$0xff]
    %v65 = vld [vmem:[#allocation2 + $0x88] sm:$0xff]
    %v66 = vld [vmem:[#allocation2 + $0x90] sm:$0xff]
    %v67 = vld [vmem:[#allocation2 + $0x98] sm:$0xff]
    %v68 = vld [vmem:[#allocation2 + $0xa0] sm:$0xff]
    %v69 = vld [vmem:[#allocation2 + $0xa8] sm:$0xff]
    %v70 = vld [vmem:[#allocation2 + $0xb0] sm:$0xff]
    %v71 = vld [vmem:[#allocation2 + $0xb8] sm:$0xff]
    %v72 = vld [vmem:[#allocation2 + $0xc0] sm:$0xff]
    %v73 = vld [vmem:[#allocation2 + $0xc8] sm:$0xff]
    %v74 = vld [vmem:[#allocation2 + $0xd0] sm:$0xff]
    %v75 = vld [vmem:[#allocation2 + $0xd8] sm:$0xff]
    %v76 = vld [vmem:[#allocation2 + $0xe0] sm:$0xff]
    %v77 = vld [vmem:[#allocation2 + $0xe8] sm:$0xff]
    %v78 = vld [vmem:[#allocation2 + $0xf0] sm:$0xff]
    %v79 = vld [vmem:[#allocation2 + $0xf8] sm:$0xff]
    %v80 = vld [vmem:[#allocation2 + $0x100] sm:$0xff]
    %v81 = vld [vmem:[#allocation2 + $0x108] sm:$0xff]
    %v82 = vld [vmem:[#allocation2 + $0x110] sm:$0xff]
    %v83 = vld [vmem:[#allocation2 + $0x118] sm:$0xff]
    %v84 = vld [vmem:[#allocation2 + $0x120] sm:$0xff]
    %v85 = vld [vmem:[#allocation2 + $0x128] sm:$0xff]
    %v86 = vld [vmem:[#allocation2 + $0x130] sm:$0xff]
    %v87 = vld [vmem:[#allocation2 + $0x138] sm:$0xff]
    %v88 = vld [vmem:[#allocation2 + $0x140] sm:$0xff]
    %v89 = vld [vmem:[#allocation2 + $0x148] sm:$0xff]
    %v90 = vld [vmem:[#allocation2 + $0x150] sm:$0xff]
    %v91 = vld [vmem:[#allocation2 + $0x158] sm:$0xff]
    %v92 = vld [vmem:[#allocation2 + $0x160] sm:$0xff]
    %v93 = vld [vmem:[#allocation2 + $0x168] sm:$0xff]
    %v94 = vld [vmem:[#allocation2 + $0x170] sm:$0xff]
    %v95 = vld [vmem:[#allocation2 + $0x178] sm:$0xff]
    %v96 = vld [vmem:[#allocation2 + $0x180] sm:$0xff]
    %v97 = vld [vmem:[#allocation2 + $0x188] sm:$0xff]
    %v98 = vld [vmem:[#allocation2 + $0x190] sm:$0xff]
    %v99 = vld [vmem:[#allocation2 + $0x198] sm:$0xff]
    %v100 = vld [vmem:[#allocation2 + $0x1a0] sm:$0xff]
    %v101 = vld [vmem:[#allocation2 + $0x1a8] sm:$0xff]
    %v102 = vld [vmem:[#allocation2 + $0x1b0] sm:$0xff]
    %v103 = vld [vmem:[#allocation2 + $0x1b8] sm:$0xff]
    %v104 = vld [vmem:[#allocation2 + $0x1c0] sm:$0xff]
    %v105 = vld [vmem:[#allocation2 + $0x1c8] sm:$0xff]
    %v106 = vld [vmem:[#allocation2 + $0x1d0] sm:$0xff]
    %v107 = vld [vmem:[#allocation2 + $0x1d8] sm:$0xff]
    %v108 = vld [vmem:[#allocation2 + $0x1e0] sm:$0xff]
    %v109 = vld [vmem:[#allocation2 + $0x1e8] sm:$0xff]
    %v110 = vld [vmem:[#allocation2 + $0x1f0] sm:$0xff]
    %v111 = vld [vmem:[#allocation2 + $0x1f8] sm:$0xff]
    %112 = vmatpush.msra.mxu0 %v78
    %113 = vmatpush.msra.mxu0 %v76
    %114 = vmatpush.msra.mxu0 %v74
    %115 = vmatpush.msra.mxu0 %v72
    %116 = vmatpush.msra.mxu0 %v70
    %117 = vmatpush.msra.mxu0 %v68
    %118 = vmatpush.msra.mxu0 %v66
    %119 = vmatpush.msra.mxu0 %v64
    %120 = vmatpush.msra.mxu0 %v62
    %121 = vmatpush.msra.mxu0 %v60
    %122 = vmatpush.msra.mxu0 %v58
    %123 = vmatpush.msra.mxu0 %v56
    %124 = vmatpush.msra.mxu0 %v54
    %125 = vmatpush.msra.mxu0 %v52
    %126 = vmatpush.msra.mxu0 %v50
    %127 = vmatpush.msra.mxu0 %v48
    %128 = vmatmul.f32.gmra.mxu0 %v46
    %v129 = vpop.f32.mrf.mxu0
    %v130 = vadd.f32 0.0, %v129
    %131 = vdwg.mxu0
    %132 = vmatpush.msra.mxu0 %v110
    %133 = vmatpush.msra.mxu0 %v108
    %134 = vmatpush.msra.mxu0 %v106
    %135 = vmatpush.msra.mxu0 %v104
    %136 = vmatpush.msra.mxu0 %v102
    %137 = vmatpush.msra.mxu0 %v100
    %138 = vmatpush.msra.mxu0 %v98
    %139 = vmatpush.msra.mxu0 %v96
    %140 = vmatpush.msra.mxu0 %v94
    %141 = vmatpush.msra.mxu0 %v92
    %142 = vmatpush.msra.mxu0 %v90
    %143 = vmatpush.msra.mxu0 %v88
    %144 = vmatpush.msra.mxu0 %v86
    %145 = vmatpush.msra.mxu0 %v84
    %146 = vmatpush.msra.mxu0 %v82
    %147 = vmatpush.msra.mxu0 %v80
    %148 = vmatmul.f32.gmra.mxu0 %v47
    %v149 = vpop.f32.mrf.mxu0
    %v150 = vadd.f32 %v130, %v149
    %151 = vdwg.mxu0
    %152 = vmatpush.msra.mxu0 %v79
    %153 = vmatpush.msra.mxu0 %v77
    %154 = vmatpush.msra.mxu0 %v75
    %155 = vmatpush.msra.mxu0 %v73
    %156 = vmatpush.msra.mxu0 %v71
    %157 = vmatpush.msra.mxu0 %v69
    %158 = vmatpush.msra.mxu0 %v67
    %159 = vmatpush.msra.mxu0 %v65
    %160 = vmatpush.msra.mxu0 %v63
    %161 = vmatpush.msra.mxu0 %v61
    %162 = vmatpush.msra.mxu0 %v59
    %163 = vmatpush.msra.mxu0 %v57
    %164 = vmatpush.msra.mxu0 %v55
    %165 = vmatpush.msra.mxu0 %v53
    %166 = vmatpush.msra.mxu0 %v51
    %167 = vmatpush.msra.mxu0 %v49
    %168 = vmatmul.f32.gmra.mxu0 %v46
    %v169 = vpop.f32.mrf.mxu0
    %v170 = vadd.f32 0.0, %v169
    %171 = vdwg.mxu0
    %172 = vmatpush.msra.mxu0 %v111
    %173 = vmatpush.msra.mxu0 %v109
    %174 = vmatpush.msra.mxu0 %v107
    %175 = vmatpush.msra.mxu0 %v105
    %176 = vmatpush.msra.mxu0 %v103
    %177 = vmatpush.msra.mxu0 %v101
    %178 = vmatpush.msra.mxu0 %v99
    %179 = vmatpush.msra.mxu0 %v97
    %180 = vmatpush.msra.mxu0 %v95
    %181 = vmatpush.msra.mxu0 %v93
    %182 = vmatpush.msra.mxu0 %v91
    %183 = vmatpush.msra.mxu0 %v89
    %184 = vmatpush.msra.mxu0 %v87
    %185 = vmatpush.msra.mxu0 %v85
    %186 = vmatpush.msra.mxu0 %v83
    %187 = vmatpush.msra.mxu0 %v81
    %188 = vmatmul.f32.gmra.mxu0 %v47
    %v189 = vpop.f32.mrf.mxu0
    %v190 = vadd.f32 %v170, %v189
    %191 = vdwg.mxu0
    %v192 = vmax.f32 %v150, 0.0
    %v193 = vmax.f32 %v190, 0.0
    %v194 = vld [vmem:[#allocation4] sm:$0xff]
    %v195 = vld [vmem:[#allocation4 + $0x8] sm:$0xff]
    %v196 = vld [vmem:[#allocation4 + $0x10] sm:$0xff]
    %v197 = vld [vmem:[#allocation4 + $0x18] sm:$0xff]
    %v198 = vld [vmem:[#allocation4 + $0x20] sm:$0xff]
    %v199 = vld [vmem:[#allocation4 + $0x28] sm:$0xff]
    %v200 = vld [vmem:[#allocation4 + $0x30] sm:$0xff]
    %v201 = vld [vmem:[#allocation4 + $0x38] sm:$0xff]
    %v202 = vld [vmem:[#allocation4 + $0x40] sm:$0xff]
    %v203 = vld [vmem:[#allocation4 + $0x48] sm:$0xff]
    %v204 = vld [vmem:[#allocation4 + $0x50] sm:$0xff]
    %v205 = vld [vmem:[#allocation4 + $0x58] sm:$0xff]
    %v206 = vld [vmem:[#allocation4 + $0x60] sm:$0xff]
    %v207 = vld [vmem:[#allocation4 + $0x68] sm:$0xff]
    %v208 = vld [vmem:[#allocation4 + $0x70] sm:$0xff]
    %v209 = vld [vmem:[#allocation4 + $0x78] sm:$0xff]
    %v210 = vld [vmem:[#allocation4 + $0x80] sm:$0xff]
    %v211 = vld [vmem:[#allocation4 + $0x88] sm:$0xff]
    %v212 = vld [vmem:[#allocation4 + $0x90] sm:$0xff]
    %v213 = vld [vmem:[#allocation4 + $0x98] sm:$0xff]
    %v214 = vld [vmem:[#allocation4 + $0xa0] sm:$0xff]
    %v215 = vld [vmem:[#allocation4 + $0xa8] sm:$0xff]
    %v216 = vld [vmem:[#allocation4 + $0xb0] sm:$0xff]
    %v217 = vld [vmem:[#allocation4 + $0xb8] sm:$0xff]
    %v218 = vld [vmem:[#allocation4 + $0xc0] sm:$0xff]
    %v219 = vld [vmem:[#allocation4 + $0xc8] sm:$0xff]
    %v220 = vld [vmem:[#allocation4 + $0xd0] sm:$0xff]
    %v221 = vld [vmem:[#allocation4 + $0xd8] sm:$0xff]
    %v222 = vld [vmem:[#allocation4 + $0xe0] sm:$0xff]
    %v223 = vld [vmem:[#allocation4 + $0xe8] sm:$0xff]
    %v224 = vld [vmem:[#allocation4 + $0xf0] sm:$0xff]
    %v225 = vld [vmem:[#allocation4 + $0xf8] sm:$0xff]
    %v226 = vld [vmem:[#allocation4 + $0x100] sm:$0xff]
    %v227 = vld [vmem:[#allocation4 + $0x108] sm:$0xff]
    %v228 = vld [vmem:[#allocation4 + $0x110] sm:$0xff]
    %v229 = vld [vmem:[#allocation4 + $0x118] sm:$0xff]
    %v230 = vld [vmem:[#allocation4 + $0x120] sm:$0xff]
    %v231 = vld [vmem:[#allocation4 + $0x128] sm:$0xff]
    %v232 = vld [vmem:[#allocation4 + $0x130] sm:$0xff]
    %v233 = vld [vmem:[#allocation4 + $0x138] sm:$0xff]
    %v234 = vld [vmem:[#allocation4 + $0x140] sm:$0xff]
    %v235 = vld [vmem:[#allocation4 + $0x148] sm:$0xff]
    %v236 = vld [vmem:[#allocation4 + $0x150] sm:$0xff]
    %v237 = vld [vmem:[#allocation4 + $0x158] sm:$0xff]
    %v238 = vld [vmem:[#allocation4 + $0x160] sm:$0xff]
    %v239 = vld [vmem:[#allocation4 + $0x168] sm:$0xff]
    %v240 = vld [vmem:[#allocation4 + $0x170] sm:$0xff]
    %v241 = vld [vmem:[#allocation4 + $0x178] sm:$0xff]
    %v242 = vld [vmem:[#allocation4 + $0x180] sm:$0xff]
    %v243 = vld [vmem:[#allocation4 + $0x188] sm:$0xff]
    %v244 = vld [vmem:[#allocation4 + $0x190] sm:$0xff]
    %v245 = vld [vmem:[#allocation4 + $0x198] sm:$0xff]
    %v246 = vld [vmem:[#allocation4 + $0x1a0] sm:$0xff]
    %v247 = vld [vmem:[#allocation4 + $0x1a8] sm:$0xff]
    %v248 = vld [vmem:[#allocation4 + $0x1b0] sm:$0xff]
    %v249 = vld [vmem:[#allocation4 + $0x1b8] sm:$0xff]
    %v250 = vld [vmem:[#allocation4 + $0x1c0] sm:$0xff]
    %v251 = vld [vmem:[#allocation4 + $0x1c8] sm:$0xff]
    %v252 = vld [vmem:[#allocation4 + $0x1d0] sm:$0xff]
    %v253 = vld [vmem:[#allocation4 + $0x1d8] sm:$0xff]
    %v254 = vld [vmem:[#allocation4 + $0x1e0] sm:$0xff]
    %v255 = vld [vmem:[#allocation4 + $0x1e8] sm:$0xff]
    %v256 = vld [vmem:[#allocation4 + $0x1f0] sm:$0xff]
    %v257 = vld [vmem:[#allocation4 + $0x1f8] sm:$0xff]
    %258 = vmatpush.msra.mxu0 %v224
    %259 = vmatpush.msra.mxu0 %v222
    %260 = vmatpush.msra.mxu0 %v220
    %261 = vmatpush.msra.mxu0 %v218
    %262 = vmatpush.msra.mxu0 %v216
    %263 = vmatpush.msra.mxu0 %v214
    %264 = vmatpush.msra.mxu0 %v212
    %265 = vmatpush.msra.mxu0 %v210
    %266 = vmatpush.msra.mxu0 %v208
    %267 = vmatpush.msra.mxu0 %v206
    %268 = vmatpush.msra.mxu0 %v204
    %269 = vmatpush.msra.mxu0 %v202
    %270 = vmatpush.msra.mxu0 %v200
    %271 = vmatpush.msra.mxu0 %v198
    %272 = vmatpush.msra.mxu0 %v196
    %273 = vmatpush.msra.mxu0 %v194
    %274 = vmatmul.f32.gmra.mxu0 %v192
    %v275 = vpop.f32.mrf.mxu0
    %v276 = vadd.f32 0.0, %v275
    %277 = vdwg.mxu0
    %278 = vmatpush.msra.mxu0 %v256
    %279 = vmatpush.msra.mxu0 %v254
    %280 = vmatpush.msra.mxu0 %v252
    %281 = vmatpush.msra.mxu0 %v250
    %282 = vmatpush.msra.mxu0 %v248
    %283 = vmatpush.msra.mxu0 %v246
    %284 = vmatpush.msra.mxu0 %v244
    %285 = vmatpush.msra.mxu0 %v242
    %286 = vmatpush.msra.mxu0 %v240
    %287 = vmatpush.msra.mxu0 %v238
    %288 = vmatpush.msra.mxu0 %v236
    %289 = vmatpush.msra.mxu0 %v234
    %290 = vmatpush.msra.mxu0 %v232
    %291 = vmatpush.msra.mxu0 %v230
    %292 = vmatpush.msra.mxu0 %v228
    %293 = vmatpush.msra.mxu0 %v226
    %294 = vmatmul.f32.gmra.mxu0 %v193
    %v295 = vpop.f32.mrf.mxu0
    %v296 = vadd.f32 %v276, %v295
    %297 = vdwg.mxu0
    %298 = vmatpush.msra.mxu0 %v225
    %299 = vmatpush.msra.mxu0 %v223
    %300 = vmatpush.msra.mxu0 %v221
    %301 = vmatpush.msra.mxu0 %v219
    %302 = vmatpush.msra.mxu0 %v217
    %303 = vmatpush.msra.mxu0 %v215
    %304 = vmatpush.msra.mxu0 %v213
    %305 = vmatpush.msra.mxu0 %v211
    %306 = vmatpush.msra.mxu0 %v209
    %307 = vmatpush.msra.mxu0 %v207
    %308 = vmatpush.msra.mxu0 %v205
    %309 = vmatpush.msra.mxu0 %v203
    %310 = vmatpush.msra.mxu0 %v201
    %311 = vmatpush.msra.mxu0 %v199
    %312 = vmatpush.msra.mxu0 %v197
    %313 = vmatpush.msra.mxu0 %v195
    %314 = vmatmul.f32.gmra.mxu0 %v192
    %v315 = vpop.f32.mrf.mxu0
    %v316 = vadd.f32 0.0, %v315
    %317 = vdwg.mxu0
    %318 = vmatpush.msra.mxu0 %v257
    %319 = vmatpush.msra.mxu0 %v255
    %320 = vmatpush.msra.mxu0 %v253
    %321 = vmatpush.msra.mxu0 %v251
    %322 = vmatpush.msra.mxu0 %v249
    %323 = vmatpush.msra.mxu0 %v247
    %324 = vmatpush.msra.mxu0 %v245
    %325 = vmatpush.msra.mxu0 %v243
    %326 = vmatpush.msra.mxu0 %v241
    %327 = vmatpush.msra.mxu0 %v239
    %328 = vmatpush.msra.mxu0 %v237
    %329 = vmatpush.msra.mxu0 %v235
    %330 = vmatpush.msra.mxu0 %v233
    %331 = vmatpush.msra.mxu0 %v231
    %332 = vmatpush.msra.mxu0 %v229
    %333 = vmatpush.msra.mxu0 %v227
    %334 = vmatmul.f32.gmra.mxu0 %v193
    %v335 = vpop.f32.mrf.mxu0
    %v336 = vadd.f32 %v316, %v335
    %337 = vdwg.mxu0
    %338 = vst [vmem:[%s3] sm:$0xff] %v296
    %339 = vst [vmem:[%s3 + $0x8] sm:$0xff] %v336
    // Predicated region
    $region22: #{forward.1} parent=1 // pred_check
      _
    $region23: #{forward.1} parent=1 // pred_check_branch
      %341 = sbr.rel (0) target = $region25
    $region24: #{forward.1} parent=1 // pred_region
      _
    $region25: #{forward.1} parent=1 // pred_fallthru
      _
    // Predicated region
    $region26: #{forward.1} parent=1 // pred_check
      _
    $region27: #{forward.1} parent=1 // pred_check_branch
      %343 = sbr.rel (0) target = $region29
    $region28: #{forward.1} parent=1 // pred_region
      _
    $region29: #{forward.1} parent=1 // pred_fallthru
      _
    %344 = vsyncpa [#allocation3], 1
    %345 = vsyncpa [#allocation5], 1

// kernel: forward.1
$region0: #{forward.1}
  #allocation0 [shape = 'u32[]', space=smem, size = 0x4, offset = 0x4, fixed_abs, tag = 'smem constant byte address 0x4 - core index']
  #allocation1 [shape = 'u32[72,128]{1,0:T(1,128)}', space=vmem, size = 0x9000, scoped, tag = 'internal scratch']
  %s0 = inlined_call_operand.vmem [shape: f32[8,256], index: 0, kind: input, shape index: {}]
  %s1 = inlined_call_operand.hbm [shape: f32[256,256], index: 1, kind: input, shape index: {}]
  %s2 = inlined_call_operand.hbm [shape: f32[256,256], index: 2, kind: input, shape index: {}]
  %s3 = inlined_call_operand.vmem [shape: f32[8,256], index: 3, kind: output, shape index: {}]
  %s4 = sld [smem:[#allocation0]]
  $region30: #{forward.1} parent=0
    _
  %s6 = ssub.s32 1, %s4
  %s7 = scalar_select 0, %s6, %s4
  $region1: #{forward.1} parent=0
    #allocation2 [shape = 'u8[262144]{0}', space=vmem, size = 0x40000, scoped, tag = 'input window, operand 1, single buffered']
    #allocation3 [shape = 's32[1]{0}', space=sflag, size = 0x4, scoped, tag = 'scoped memory for forward.1']
    #allocation4 [shape = 'u8[262144]{0}', space=vmem, size = 0x40000, scoped, tag = 'input window, operand 2, single buffered']
    #allocation5 [shape = 's32[1]{0}', space=sflag, size = 0x4, scoped, tag = 'scoped memory for forward.1']
    %8 = vsyncpa [#allocation3], 0
    %9 = vsyncpa [#allocation5], 0
    // Predicated region
    $region2: #{forward.1} parent=1 // pred_check
      _
    $region3: #{forward.1} parent=1 // pred_check_branch
      %11 = sbr.rel (0) target = $region5
    $region4: #{forward.1} parent=1 // pred_region
      _
    $region5: #{forward.1} parent=1 // pred_fallthru
      _
    // Predicated region
    $region6: #{forward.1} parent=1 // pred_check
      _
    $region7: #{forward.1} parent=1 // pred_check_branch
      %13 = sbr.rel (0) target = $region9
    $region8: #{forward.1} parent=1 // pred_region
      %15 = vsyncadd [#allocation3], 0
      %s16 = sshll.u32 %s1, 4
      %s17 = int_to_ptr.hbm [resolvable:$true] %s16
      %s18 = sshll.u32 [#allocation2], 4
      %s19 = int_to_ptr.vmem [resolvable:$true] %s18
      %24 = dma.hbm_to_vmem [thread:$0]  %s17, 8192, %s19, [#allocation3], 256, 256, 16
    $region9: #{forward.1} parent=1 // pred_fallthru
      _
    // Predicated region
    $region10: #{forward.1} parent=1 // pred_check
      _
    $region11: #{forward.1} parent=1 // pred_check_branch
      %26 = sbr.rel (0) target = $region13
    $region12: #{forward.1} parent=1 // pred_region
      %28 = vsyncadd [#allocation5], 0
      %s29 = sshll.u32 %s2, 4
      %s30 = int_to_ptr.hbm [resolvable:$true] %s29
      %s31 = sshll.u32 [#allocation4], 4
      %s32 = int_to_ptr.vmem [resolvable:$true] %s31
      %37 = dma.hbm_to_vmem [thread:$0]  %s30, 8192, %s32, [#allocation5], 256, 256, 16
    $region13: #{forward.1} parent=1 // pred_fallthru
      _
    // Predicated region
    $region14: #{forward.1} parent=1 // pred_check
      _
    $region15: #{forward.1} parent=1 // pred_check_branch
      %39 = sbr.rel (0) target = $region17
    $region16: #{forward.1} parent=1 // pred_region
      %41 = dma.done [#allocation3], 8192
    $region17: #{forward.1} parent=1 // pred_fallthru
      _
    // Predicated region
    $region18: #{forward.1} parent=1 // pred_check
      _
    $region19: #{forward.1} parent=1 // pred_check_branch
      %43 = sbr.rel (0) target = $region21
    $region20: #{forward.1} parent=1 // pred_region
      %45 = dma.done [#allocation5], 8192
    $region21: #{forward.1} parent=1 // pred_fallthru
      _
    %v46 = vld [vmem:[%s0] sm:$0xff]
    %v47 = vld [vmem:[%s0 + $0x8] sm:$0xff]
    %v48 = vld [vmem:[#allocation2] sm:$0xff]
    %v49 = vld [vmem:[#allocation2 + $0x8] sm:$0xff]
    %v50 = vld [vmem:[#allocation2 + $0x10] sm:$0xff]
    %v51 = vld [vmem:[#allocation2 + $0x18] sm:$0xff]
    %v52 = vld [vmem:[#allocation2 + $0x20] sm:$0xff]
    %v53 = vld [vmem:[#allocation2 + $0x28] sm:$0xff]
    %v54 = vld [vmem:[#allocation2 + $0x30] sm:$0xff]
    %v55 = vld [vmem:[#allocation2 + $0x38] sm:$0xff]
    %v56 = vld [vmem:[#allocation2 + $0x40] sm:$0xff]
    %v57 = vld [vmem:[#allocation2 + $0x48] sm:$0xff]
    %v58 = vld [vmem:[#allocation2 + $0x50] sm:$0xff]
    %v59 = vld [vmem:[#allocation2 + $0x58] sm:$0xff]
    %v60 = vld [vmem:[#allocation2 + $0x60] sm:$0xff]
    %v61 = vld [vmem:[#allocation2 + $0x68] sm:$0xff]
    %v62 = vld [vmem:[#allocation2 + $0x70] sm:$0xff]
    %v63 = vld [vmem:[#allocation2 + $0x78] sm:$0xff]
    %v64 = vld [vmem:[#allocation2 + $0x80] sm:$0xff]
    %v65 = vld [vmem:[#allocation2 + $0x88] sm:$0xff]
    %v66 = vld [vmem:[#allocation2 + $0x90] sm:$0xff]
    %v67 = vld [vmem:[#allocation2 + $0x98] sm:$0xff]
    %v68 = vld [vmem:[#allocation2 + $0xa0] sm:$0xff]
    %v69 = vld [vmem:[#allocation2 + $0xa8] sm:$0xff]
    %v70 = vld [vmem:[#allocation2 + $0xb0] sm:$0xff]
    %v71 = vld [vmem:[#allocation2 + $0xb8] sm:$0xff]
    %v72 = vld [vmem:[#allocation2 + $0xc0] sm:$0xff]
    %v73 = vld [vmem:[#allocation2 + $0xc8] sm:$0xff]
    %v74 = vld [vmem:[#allocation2 + $0xd0] sm:$0xff]
    %v75 = vld [vmem:[#allocation2 + $0xd8] sm:$0xff]
    %v76 = vld [vmem:[#allocation2 + $0xe0] sm:$0xff]
    %v77 = vld [vmem:[#allocation2 + $0xe8] sm:$0xff]
    %v78 = vld [vmem:[#allocation2 + $0xf0] sm:$0xff]
    %v79 = vld [vmem:[#allocation2 + $0xf8] sm:$0xff]
    %v80 = vld [vmem:[#allocation2 + $0x100] sm:$0xff]
    %v81 = vld [vmem:[#allocation2 + $0x108] sm:$0xff]
    %v82 = vld [vmem:[#allocation2 + $0x110] sm:$0xff]
    %v83 = vld [vmem:[#allocation2 + $0x118] sm:$0xff]
    %v84 = vld [vmem:[#allocation2 + $0x120] sm:$0xff]
    %v85 = vld [vmem:[#allocation2 + $0x128] sm:$0xff]
    %v86 = vld [vmem:[#allocation2 + $0x130] sm:$0xff]
    %v87 = vld [vmem:[#allocation2 + $0x138] sm:$0xff]
    %v88 = vld [vmem:[#allocation2 + $0x140] sm:$0xff]
    %v89 = vld [vmem:[#allocation2 + $0x148] sm:$0xff]
    %v90 = vld [vmem:[#allocation2 + $0x150] sm:$0xff]
    %v91 = vld [vmem:[#allocation2 + $0x158] sm:$0xff]
    %v92 = vld [vmem:[#allocation2 + $0x160] sm:$0xff]
    %v93 = vld [vmem:[#allocation2 + $0x168] sm:$0xff]
    %v94 = vld [vmem:[#allocation2 + $0x170] sm:$0xff]
    %v95 = vld [vmem:[#allocation2 + $0x178] sm:$0xff]
    %v96 = vld [vmem:[#allocation2 + $0x180] sm:$0xff]
    %v97 = vld [vmem:[#allocation2 + $0x188] sm:$0xff]
    %v98 = vld [vmem:[#allocation2 + $0x190] sm:$0xff]
    %v99 = vld [vmem:[#allocation2 + $0x198] sm:$0xff]
    %v100 = vld [vmem:[#allocation2 + $0x1a0] sm:$0xff]
    %v101 = vld [vmem:[#allocation2 + $0x1a8] sm:$0xff]
    %v102 = vld [vmem:[#allocation2 + $0x1b0] sm:$0xff]
    %v103 = vld [vmem:[#allocation2 + $0x1b8] sm:$0xff]
    %v104 = vld [vmem:[#allocation2 + $0x1c0] sm:$0xff]
    %v105 = vld [vmem:[#allocation2 + $0x1c8] sm:$0xff]
    %v106 = vld [vmem:[#allocation2 + $0x1d0] sm:$0xff]
    %v107 = vld [vmem:[#allocation2 + $0x1d8] sm:$0xff]
    %v108 = vld [vmem:[#allocation2 + $0x1e0] sm:$0xff]
    %v109 = vld [vmem:[#allocation2 + $0x1e8] sm:$0xff]
    %v110 = vld [vmem:[#allocation2 + $0x1f0] sm:$0xff]
    %v111 = vld [vmem:[#allocation2 + $0x1f8] sm:$0xff]
    %112 = vmatpush.msra.mxu0 %v78
    %113 = vmatpush.msra.mxu0 %v76
    %114 = vmatpush.msra.mxu0 %v74
    %115 = vmatpush.msra.mxu0 %v72
    %116 = vmatpush.msra.mxu0 %v70
    %117 = vmatpush.msra.mxu0 %v68
    %118 = vmatpush.msra.mxu0 %v66
    %119 = vmatpush.msra.mxu0 %v64
    %120 = vmatpush.msra.mxu0 %v62
    %121 = vmatpush.msra.mxu0 %v60
    %122 = vmatpush.msra.mxu0 %v58
    %123 = vmatpush.msra.mxu0 %v56
    %124 = vmatpush.msra.mxu0 %v54
    %125 = vmatpush.msra.mxu0 %v52
    %126 = vmatpush.msra.mxu0 %v50
    %127 = vmatpush.msra.mxu0 %v48
    %128 = vmatmul.f32.gmra.mxu0 %v46
    %v129 = vpop.f32.mrf.mxu0
    %v130 = vadd.f32 0.0, %v129
    %131 = vdwg.mxu0
    %132 = vmatpush.msra.mxu0 %v110
    %133 = vmatpush.msra.mxu0 %v108
    %134 = vmatpush.msra.mxu0 %v106
    %135 = vmatpush.msra.mxu0 %v104
    %136 = vmatpush.msra.mxu0 %v102
    %137 = vmatpush.msra.mxu0 %v100
    %138 = vmatpush.msra.mxu0 %v98
    %139 = vmatpush.msra.mxu0 %v96
    %140 = vmatpush.msra.mxu0 %v94
    %141 = vmatpush.msra.mxu0 %v92
    %142 = vmatpush.msra.mxu0 %v90
    %143 = vmatpush.msra.mxu0 %v88
    %144 = vmatpush.msra.mxu0 %v86
    %145 = vmatpush.msra.mxu0 %v84
    %146 = vmatpush.msra.mxu0 %v82
    %147 = vmatpush.msra.mxu0 %v80
    %148 = vmatmul.f32.gmra.mxu0 %v47
    %v149 = vpop.f32.mrf.mxu0
    %v150 = vadd.f32 %v130, %v149
    %151 = vdwg.mxu0
    %152 = vmatpush.msra.mxu0 %v79
    %153 = vmatpush.msra.mxu0 %v77
    %154 = vmatpush.msra.mxu0 %v75
    %155 = vmatpush.msra.mxu0 %v73
    %156 = vmatpush.msra.mxu0 %v71
    %157 = vmatpush.msra.mxu0 %v69
    %158 = vmatpush.msra.mxu0 %v67
    %159 = vmatpush.msra.mxu0 %v65
    %160 = vmatpush.msra.mxu0 %v63
    %161 = vmatpush.msra.mxu0 %v61
    %162 = vmatpush.msra.mxu0 %v59
    %163 = vmatpush.msra.mxu0 %v57
    %164 = vmatpush.msra.mxu0 %v55
    %165 = vmatpush.msra.mxu0 %v53
    %166 = vmatpush.msra.mxu0 %v51
    %167 = vmatpush.msra.mxu0 %v49
    %168 = vmatmul.f32.gmra.mxu0 %v46
    %v169 = vpop.f32.mrf.mxu0
    %v170 = vadd.f32 0.0, %v169
    %171 = vdwg.mxu0
    %172 = vmatpush.msra.mxu0 %v111
    %173 = vmatpush.msra.mxu0 %v109
    %174 = vmatpush.msra.mxu0 %v107
    %175 = vmatpush.msra.mxu0 %v105
    %176 = vmatpush.msra.mxu0 %v103
    %177 = vmatpush.msra.mxu0 %v101
    %178 = vmatpush.msra.mxu0 %v99
    %179 = vmatpush.msra.mxu0 %v97
    %180 = vmatpush.msra.mxu0 %v95
    %181 = vmatpush.msra.mxu0 %v93
    %182 = vmatpush.msra.mxu0 %v91
    %183 = vmatpush.msra.mxu0 %v89
    %184 = vmatpush.msra.mxu0 %v87
    %185 = vmatpush.msra.mxu0 %v85
    %186 = vmatpush.msra.mxu0 %v83
    %187 = vmatpush.msra.mxu0 %v81
    %188 = vmatmul.f32.gmra.mxu0 %v47
    %v189 = vpop.f32.mrf.mxu0
    %v190 = vadd.f32 %v170, %v189
    %191 = vdwg.mxu0
    %v192 = vmax.f32 %v150, 0.0
    %v193 = vmax.f32 %v190, 0.0
    %v194 = vld [vmem:[#allocation4] sm:$0xff]
    %v195 = vld [vmem:[#allocation4 + $0x8] sm:$0xff]
    %v196 = vld [vmem:[#allocation4 + $0x10] sm:$0xff]
    %v197 = vld [vmem:[#allocation4 + $0x18] sm:$0xff]
    %v198 = vld [vmem:[#allocation4 + $0x20] sm:$0xff]
    %v199 = vld [vmem:[#allocation4 + $0x28] sm:$0xff]
    %v200 = vld [vmem:[#allocation4 + $0x30] sm:$0xff]
    %v201 = vld [vmem:[#allocation4 + $0x38] sm:$0xff]
    %v202 = vld [vmem:[#allocation4 + $0x40] sm:$0xff]
    %v203 = vld [vmem:[#allocation4 + $0x48] sm:$0xff]
    %v204 = vld [vmem:[#allocation4 + $0x50] sm:$0xff]
    %v205 = vld [vmem:[#allocation4 + $0x58] sm:$0xff]
    %v206 = vld [vmem:[#allocation4 + $0x60] sm:$0xff]
    %v207 = vld [vmem:[#allocation4 + $0x68] sm:$0xff]
    %v208 = vld [vmem:[#allocation4 + $0x70] sm:$0xff]
    %v209 = vld [vmem:[#allocation4 + $0x78] sm:$0xff]
    %v210 = vld [vmem:[#allocation4 + $0x80] sm:$0xff]
    %v211 = vld [vmem:[#allocation4 + $0x88] sm:$0xff]
    %v212 = vld [vmem:[#allocation4 + $0x90] sm:$0xff]
    %v213 = vld [vmem:[#allocation4 + $0x98] sm:$0xff]
    %v214 = vld [vmem:[#allocation4 + $0xa0] sm:$0xff]
    %v215 = vld [vmem:[#allocation4 + $0xa8] sm:$0xff]
    %v216 = vld [vmem:[#allocation4 + $0xb0] sm:$0xff]
    %v217 = vld [vmem:[#allocation4 + $0xb8] sm:$0xff]
    %v218 = vld [vmem:[#allocation4 + $0xc0] sm:$0xff]
    %v219 = vld [vmem:[#allocation4 + $0xc8] sm:$0xff]
    %v220 = vld [vmem:[#allocation4 + $0xd0] sm:$0xff]
    %v221 = vld [vmem:[#allocation4 + $0xd8] sm:$0xff]
    %v222 = vld [vmem:[#allocation4 + $0xe0] sm:$0xff]
    %v223 = vld [vmem:[#allocation4 + $0xe8] sm:$0xff]
    %v224 = vld [vmem:[#allocation4 + $0xf0] sm:$0xff]
    %v225 = vld [vmem:[#allocation4 + $0xf8] sm:$0xff]
    %v226 = vld [vmem:[#allocation4 + $0x100] sm:$0xff]
    %v227 = vld [vmem:[#allocation4 + $0x108] sm:$0xff]
    %v228 = vld [vmem:[#allocation4 + $0x110] sm:$0xff]
    %v229 = vld [vmem:[#allocation4 + $0x118] sm:$0xff]
    %v230 = vld [vmem:[#allocation4 + $0x120] sm:$0xff]
    %v231 = vld [vmem:[#allocation4 + $0x128] sm:$0xff]
    %v232 = vld [vmem:[#allocation4 + $0x130] sm:$0xff]
    %v233 = vld [vmem:[#allocation4 + $0x138] sm:$0xff]
    %v234 = vld [vmem:[#allocation4 + $0x140] sm:$0xff]
    %v235 = vld [vmem:[#allocation4 + $0x148] sm:$0xff]
    %v236 = vld [vmem:[#allocation4 + $0x150] sm:$0xff]
    %v237 = vld [vmem:[#allocation4 + $0x158] sm:$0xff]
    %v238 = vld [vmem:[#allocation4 + $0x160] sm:$0xff]
    %v239 = vld [vmem:[#allocation4 + $0x168] sm:$0xff]
    %v240 = vld [vmem:[#allocation4 + $0x170] sm:$0xff]
    %v241 = vld [vmem:[#allocation4 + $0x178] sm:$0xff]
    %v242 = vld [vmem:[#allocation4 + $0x180] sm:$0xff]
    %v243 = vld [vmem:[#allocation4 + $0x188] sm:$0xff]
    %v244 = vld [vmem:[#allocation4 + $0x190] sm:$0xff]
    %v245 = vld [vmem:[#allocation4 + $0x198] sm:$0xff]
    %v246 = vld [vmem:[#allocation4 + $0x1a0] sm:$0xff]
    %v247 = vld [vmem:[#allocation4 + $0x1a8] sm:$0xff]
    %v248 = vld [vmem:[#allocation4 + $0x1b0] sm:$0xff]
    %v249 = vld [vmem:[#allocation4 + $0x1b8] sm:$0xff]
    %v250 = vld [vmem:[#allocation4 + $0x1c0] sm:$0xff]
    %v251 = vld [vmem:[#allocation4 + $0x1c8] sm:$0xff]
    %v252 = vld [vmem:[#allocation4 + $0x1d0] sm:$0xff]
    %v253 = vld [vmem:[#allocation4 + $0x1d8] sm:$0xff]
    %v254 = vld [vmem:[#allocation4 + $0x1e0] sm:$0xff]
    %v255 = vld [vmem:[#allocation4 + $0x1e8] sm:$0xff]
    %v256 = vld [vmem:[#allocation4 + $0x1f0] sm:$0xff]
    %v257 = vld [vmem:[#allocation4 + $0x1f8] sm:$0xff]
    %258 = vmatpush.msra.mxu0 %v224
    %259 = vmatpush.msra.mxu0 %v222
    %260 = vmatpush.msra.mxu0 %v220
    %261 = vmatpush.msra.mxu0 %v218
    %262 = vmatpush.msra.mxu0 %v216
    %263 = vmatpush.msra.mxu0 %v214
    %264 = vmatpush.msra.mxu0 %v212
    %265 = vmatpush.msra.mxu0 %v210
    %266 = vmatpush.msra.mxu0 %v208
    %267 = vmatpush.msra.mxu0 %v206
    %268 = vmatpush.msra.mxu0 %v204
    %269 = vmatpush.msra.mxu0 %v202
    %270 = vmatpush.msra.mxu0 %v200
    %271 = vmatpush.msra.mxu0 %v198
    %272 = vmatpush.msra.mxu0 %v196
    %273 = vmatpush.msra.mxu0 %v194
    %274 = vmatmul.f32.gmra.mxu0 %v192
    %v275 = vpop.f32.mrf.mxu0
    %v276 = vadd.f32 0.0, %v275
    %277 = vdwg.mxu0
    %278 = vmatpush.msra.mxu0 %v256
    %279 = vmatpush.msra.mxu0 %v254
    %280 = vmatpush.msra.mxu0 %v252
    %281 = vmatpush.msra.mxu0 %v250
    %282 = vmatpush.msra.mxu0 %v248
    %283 = vmatpush.msra.mxu0 %v246
    %284 = vmatpush.msra.mxu0 %v244
    %285 = vmatpush.msra.mxu0 %v242
    %286 = vmatpush.msra.mxu0 %v240
    %287 = vmatpush.msra.mxu0 %v238
    %288 = vmatpush.msra.mxu0 %v236
    %289 = vmatpush.msra.mxu0 %v234
    %290 = vmatpush.msra.mxu0 %v232
    %291 = vmatpush.msra.mxu0 %v230
    %292 = vmatpush.msra.mxu0 %v228
    %293 = vmatpush.msra.mxu0 %v226
    %294 = vmatmul.f32.gmra.mxu0 %v193
    %v295 = vpop.f32.mrf.mxu0
    %v296 = vadd.f32 %v276, %v295
    %297 = vdwg.mxu0
    %298 = vmatpush.msra.mxu0 %v225
    %299 = vmatpush.msra.mxu0 %v223
    %300 = vmatpush.msra.mxu0 %v221
    %301 = vmatpush.msra.mxu0 %v219
    %302 = vmatpush.msra.mxu0 %v217
    %303 = vmatpush.msra.mxu0 %v215
    %304 = vmatpush.msra.mxu0 %v213
    %305 = vmatpush.msra.mxu0 %v211
    %306 = vmatpush.msra.mxu0 %v209
    %307 = vmatpush.msra.mxu0 %v207
    %308 = vmatpush.msra.mxu0 %v205
    %309 = vmatpush.msra.mxu0 %v203
    %310 = vmatpush.msra.mxu0 %v201
    %311 = vmatpush.msra.mxu0 %v199
    %312 = vmatpush.msra.mxu0 %v197
    %313 = vmatpush.msra.mxu0 %v195
    %314 = vmatmul.f32.gmra.mxu0 %v192
    %v315 = vpop.f32.mrf.mxu0
    %v316 = vadd.f32 0.0, %v315
    %317 = vdwg.mxu0
    %318 = vmatpush.msra.mxu0 %v257
    %319 = vmatpush.msra.mxu0 %v255
    %320 = vmatpush.msra.mxu0 %v253
    %321 = vmatpush.msra.mxu0 %v251
    %322 = vmatpush.msra.mxu0 %v249
    %323 = vmatpush.msra.mxu0 %v247
    %324 = vmatpush.msra.mxu0 %v245
    %325 = vmatpush.msra.mxu0 %v243
    %326 = vmatpush.msra.mxu0 %v241
    %327 = vmatpush.msra.mxu0 %v239
    %328 = vmatpush.msra.mxu0 %v237
    %329 = vmatpush.msra.mxu0 %v235
    %330 = vmatpush.msra.mxu0 %v233
    %331 = vmatpush.msra.mxu0 %v231
    %332 = vmatpush.msra.mxu0 %v229
    %333 = vmatpush.msra.mxu0 %v227
    %334 = vmatmul.f32.gmra.mxu0 %v193
    %v335 = vpop.f32.mrf.mxu0
    %v336 = vadd.f32 %v316, %v335
    %337 = vdwg.mxu0
    %338 = vst [vmem:[%s3] sm:$0xff] %v296
    %339 = vst [vmem:[%s3 + $0x8] sm:$0xff] %v336
    // Predicated region
    $region22: #{forward.1} parent=1 // pred_check
      _
    $region23: #{forward.1} parent=1 // pred_check_branch
      %341 = sbr.rel (0) target = $region25
    $region24: #{forward.1} parent=1 // pred_region
      _
    $region25: #{forward.1} parent=1 // pred_fallthru
      _
    // Predicated region
    $region26: #{forward.1} parent=1 // pred_check
      _
    $region27: #{forward.1} parent=1 // pred_check_branch
      %343 = sbr.rel (0) target = $region29
    $region28: #{forward.1} parent=1 // pred_region
      _
    $region29: #{forward.1} parent=1 // pred_fallthru
      _
    %344 = vsyncpa [#allocation3], 1
    %345 = vsyncpa [#allocation5], 1

</llo_original>
